<compile_context>
chip_gen: v7x
topology: tpu7x:2x2x1
jax: 0.10.0
libtpu: 0.0.40
codegen_flags: <defaults>
</compile_context>

<pallas_src>
import jax
import jax.numpy as jnp
from jax.experimental import pallas as pl
from jax.experimental.pallas import tpu as pltpu


NEG_SLOPE = 0.01   # nn.LeakyReLU default
LANE = 128
SUBLANE = 16       # bf16 sublane packing -> keep batch tiles multiples of 16
EPS = 1e-5


def _round_up(n, m):
    return ((n + m - 1) // m) * m


def _leaky_relu(x):
    return jnp.where(x > 0, x, NEG_SLOPE * x)


# ----------------------------------------------------------------------------
# Kernel
# ----------------------------------------------------------------------------
def mlp_kernel(x_ref,
               wc_ref, bc_ref,      # compress: Linear(embed -> common_p) + ReLU
               w1_ref, b1_ref,      # fc1 with bn1 folded in (rows padded to common_p)
               w2_ref, b2_ref,      # fc2 with bn2 folded in
               w3_ref, b3_ref,      # fc3 (columns zero-padded to lane-dense width)
               o_ref):
    # compress: Linear -> ReLU -> Dropout(identity in eval).
    # x arrives f32; cast to bf16 here (no separate wrapper pass over x).
    h = jnp.dot(x_ref[...].astype(jnp.bfloat16), wc_ref[...],
                preferred_element_type=jnp.float32) + bc_ref[...]
    h = jnp.maximum(h, 0.0)

    # fc1 (+ folded bn1) -> LeakyReLU -> Dropout(identity)
    h = jnp.dot(h.astype(jnp.bfloat16), w1_ref[...],
                preferred_element_type=jnp.float32) + b1_ref[...]
    h = _leaky_relu(h)

    # fc2 (+ folded bn2) -> LeakyReLU -> Dropout(identity)
    h = jnp.dot(h.astype(jnp.bfloat16), w2_ref[...],
                preferred_element_type=jnp.float32) + b2_ref[...]
    h = _leaky_relu(h)

    # fc3 -> lane-dense bf16 store (f32 accumulation kept)
    out = jnp.dot(h.astype(jnp.bfloat16), w3_ref[...],
                  preferred_element_type=jnp.float32) + b3_ref[...]
    o_ref[...] = out.astype(o_ref.dtype)


# ----------------------------------------------------------------------------
# One-time parameter preparation (hoisted out of the per-call path)
# ----------------------------------------------------------------------------
def prepare_params(params):
    """Fold BatchNorm1d (eval) into the preceding Linear, zero-pad the compress
    and output widths to lane multiples, cast weights to bf16 and biases to f32
    rows.  Call once; reuse the result for every forward call."""
    class_num = params["w3"].shape[1]
    common = params["wc"].shape[1]

    # bn(x @ W + b) = x @ (W * s) + (b * s + t)
    s1 = params["bn1_gamma"] / jnp.sqrt(params["bn1_var"] + EPS)
    t1 = params["bn1_beta"] - params["bn1_mean"] * s1
    s2 = params["bn2_gamma"] / jnp.sqrt(params["bn2_var"] + EPS)
    t2 = params["bn2_beta"] - params["bn2_mean"] * s2

    w1f = params["w1"] * s1[None, :]
    b1f = params["b1"] * s1 + t1
    w2f = params["w2"] * s2[None, :]
    b2f = params["b2"] * s2 + t2

    # Zero-pad the compress width to a lane multiple.  Padded wc cols / bc
    # entries are 0 -> ReLU(0) = 0 -> zero contribution through padded w1 rows.
    cp = _round_up(max(common, LANE), LANE)
    wcp = jnp.zeros((params["wc"].shape[0], cp), jnp.float32).at[:, :common].set(params["wc"])
    bcp = jnp.zeros((cp,), jnp.float32).at[:common].set(params["bc"])
    w1p = jnp.zeros((cp, w1f.shape[1]), jnp.float32).at[:common, :].set(w1f)

    # Zero-pad the output width to a lane multiple (wrapper slices back).
    n_out = _round_up(max(class_num, LANE), LANE)
    w3p = jnp.zeros((params["w3"].shape[0], n_out), jnp.float32).at[:, :class_num].set(params["w3"])
    b3p = jnp.zeros((n_out,), jnp.float32).at[:class_num].set(params["b3"])

    bf16 = lambda w: w.astype(jnp.bfloat16)
    row = lambda v: v.reshape(1, -1).astype(jnp.float32)

    return dict(
        wc=bf16(wcp), bc=row(bcp),
        w1=bf16(w1p), b1=row(b1f),
        w2=bf16(w2f), b2=row(b2f),
        w3=bf16(w3p), b3=row(b3p),
        class_num=class_num,
    )


# ----------------------------------------------------------------------------
# Forward
# ----------------------------------------------------------------------------
def downstream_model_single(x, prep, *, batch_tile=1024):
    """x: (B, embed_size) float32.  prep: output of prepare_params()."""
    B, E = x.shape
    class_num = prep["class_num"]
    n_out = prep["w3"].shape[1]
    cp = prep["wc"].shape[1]
    d1 = prep["w1"].shape[1]
    d2 = prep["w2"].shape[1]

    # --- Batch tiling: spread the remainder instead of rounding B up to a full
    # extra tile; ensure >= 2 grid steps when the batch allows (v7x dual-TC).
    num_tiles = max(1, pl.cdiv(B, batch_tile))
    if B >= 2 * SUBLANE:
        num_tiles = max(num_tiles, 2)
    TB = _round_up(pl.cdiv(B, num_tiles), SUBLANE)
    num_tiles = pl.cdiv(B, TB)
    Bp = num_tiles * TB
    xk = x if Bp == B else jnp.pad(x, ((0, Bp - B), (0, 0)))

    weights = (prep["wc"], prep["bc"], prep["w1"], prep["b1"],
               prep["w2"], prep["b2"], prep["w3"], prep["b3"])

    # Constant-index (0, 0) blocks -> weights stay VMEM-resident across grid steps.
    # NOTE(v7x): for production-sized weights add pipeline_mode=pl.Buffered(1) here
    # (or raise vmem_limit_bytes) to avoid default double-buffering of constant blocks.
    def fixed_spec(a):
        return pl.BlockSpec(a.shape, lambda i: (0, 0))

    in_specs = [pl.BlockSpec((TB, E), lambda i: (i, 0))] + [fixed_spec(a) for a in weights]
    out_specs = pl.BlockSpec((TB, n_out), lambda i: (i, 0))

    flops = 2 * Bp * (E * cp + cp * d1 + d1 * d2 + d2 * n_out)
    bytes_accessed = (
        xk.size * xk.dtype.itemsize
        + sum(int(w.size) * w.dtype.itemsize for w in weights)
        + Bp * n_out * 2  # bf16 logits writeback
    )

    out = pl.pallas_call(
        mlp_kernel,
        out_shape=jax.ShapeDtypeStruct((Bp, n_out), jnp.bfloat16),
        grid=(num_tiles,),
        in_specs=in_specs,
        out_specs=out_specs,
        compiler_params=pltpu.CompilerParams(
            dimension_semantics=("parallel",),
        ),
        cost_estimate=pl.CostEstimate(
            flops=flops, transcendentals=0, bytes_accessed=bytes_accessed),
    )(xk, *weights)

    return out[:B, :class_num].astype(jnp.float32)


# ----------------------------------------------------------------------------
# Synthetic params + references
# ----------------------------------------------------------------------------
def init_params(key, embed_size, common_dim, class_num):
    """Deterministic synthetic parameters matching the module's shapes."""
    ks = jax.random.split(key, 8)

    def lin(k, fan_in, fan_out):
        # stored as (in, out) = transpose of PyTorch nn.Linear.weight
        w = jax.random.normal(k, (fan_in, fan_out), jnp.float32) * (1.0 / jnp.sqrt(fan_in))
        b = jnp.linspace(-0.1, 0.1, fan_out, dtype=jnp.float32)
        return w, b

    wc, bc = lin(ks[0], embed_size, common_dim)
    w1, b1 = lin(ks[1], common_dim, 512)
    w2, b2 = lin(ks[2], 512, 256)
    w3, b3 = lin(ks[3], 256, class_num)

    return dict(
        wc=wc, bc=bc, w1=w1, b1=b1, w2=w2, b2=b2, w3=w3, b3=b3,
        bn1_gamma=1.0 + 0.05 * jax.random.normal(ks[4], (512,), jnp.float32),
        bn1_beta=0.02 * jax.random.normal(ks[5], (512,), jnp.float32),
        bn1_mean=jnp.linspace(-0.2, 0.2, 512, dtype=jnp.float32),
        bn1_var=jnp.ones((512,), jnp.float32) * 0.9,
        bn2_gamma=1.0 + 0.05 * jax.random.normal(ks[6], (256,), jnp.float32),
        bn2_beta=0.02 * jax.random.normal(ks[7], (256,), jnp.float32),
        bn2_mean=jnp.linspace(-0.1, 0.1, 256, dtype=jnp.float32),
        bn2_var=jnp.ones((256,), jnp.float32) * 1.1,
    )


def reference_forward_f32(x, params):
    """Pure-JAX f32 reference with exact PyTorch eval semantics."""
    h = jnp.maximum(x @ params["wc"] + params["bc"], 0.0)
    h = h @ params["w1"] + params["b1"]
    h = (h - params["bn1_mean"]) / jnp.sqrt(params["bn1_var"] + EPS) * params["bn1_gamma"] + params["bn1_beta"]
    h = jnp.where(h > 0, h, NEG_SLOPE * h)
    h = h @ params["w2"] + params["b2"]
    h = (h - params["bn2_mean"]) / jnp.sqrt(params["bn2_var"] + EPS) * params["bn2_gamma"] + params["bn2_beta"]
    h = jnp.where(h > 0, h, NEG_SLOPE * h)
    return h @ params["w3"] + params["b3"]


def reference_forward_bf16(x, params):
    """Pure-JAX reference mirroring the kernel's numerics (BN folded, bf16 matmul
    inputs, f32 accumulation, bf16 final store)."""
    s1 = params["bn1_gamma"] / jnp.sqrt(params["bn1_var"] + EPS)
    t1 = params["bn1_beta"] - params["bn1_mean"] * s1
    s2 = params["bn2_gamma"] / jnp.sqrt(params["bn2_var"] + EPS)
    t2 = params["bn2_beta"] - params["bn2_mean"] * s2
    w1f, b1f = params["w1"] * s1[None, :], params["b1"] * s1 + t1
    w2f, b2f = params["w2"] * s2[None, :], params["b2"] * s2 + t2

    dot = lambda a, b: jnp.dot(a.astype(jnp.bfloat16), b.astype(jnp.bfloat16),
                               preferred_element_type=jnp.float32)
    h = jnp.maximum(dot(x, params["wc"]) + params["bc"], 0.0)
    h = dot(h, w1f) + b1f
    h = jnp.where(h > 0, h, NEG_SLOPE * h)
    h = dot(h, w2f) + b2f
    h = jnp.where(h > 0, h, NEG_SLOPE * h)
    out = dot(h, params["w3"]) + params["b3"]
    return out.astype(jnp.bfloat16).astype(jnp.float32)


if __name__ == "__main__":
    EMBED, COMMON, CLASSES = 64, 32, 10

    key = jax.random.PRNGKey(0)
    k_x, k_x2, k_p = jax.random.split(key, 3)
    params = init_params(k_p, EMBED, COMMON, CLASSES)
    prep = prepare_params(params)   # one-time prep, reused across calls

    # --- small batch (single grid step) ---
    B = 8
    x = jax.random.normal(k_x, (B, EMBED), jnp.float32)
    out = jax.block_until_ready(downstream_model_single(x, prep))
    assert out.shape == (B, CLASSES)
    assert jnp.allclose(out, reference_forward_bf16(x, params), atol=2e-2, rtol=2e-2), \
        "mismatch vs bf16 reference (B=8)"
    assert jnp.allclose(out, reference_forward_f32(x, params), atol=1e-1, rtol=1e-1), \
        "mismatch vs f32 reference (B=8)"

    # --- ragged batch exercising >= 2 grid steps + minimal padding ---
    B2 = 40
    x2 = jax.random.normal(k_x2, (B2, EMBED), jnp.float32)
    out2 = jax.block_until_ready(downstream_model_single(x2, prep))
    assert out2.shape == (B2, CLASSES)
    assert jnp.allclose(out2, reference_forward_bf16(x2, params), atol=2e-2, rtol=2e-2), \
        "mismatch vs bf16 reference (B=40)"
    assert jnp.allclose(out2, reference_forward_f32(x2, params), atol=1e-1, rtol=1e-1), \
        "mismatch vs f32 reference (B=40)"

    print("KERNEL_OK")
</pallas_src>

<mosaic_0001>
module attributes {stable_mosaic.version = 11 : i64} {
  func.func @mlp_kernel(%arg0: i32, %arg1: memref<16x64xf32, #tpu.memory_space<vmem>>, %arg2: memref<64x128xbf16, #tpu.memory_space<vmem>>, %arg3: memref<1x128xf32, #tpu.memory_space<vmem>>, %arg4: memref<128x512xbf16, #tpu.memory_space<vmem>>, %arg5: memref<1x512xf32, #tpu.memory_space<vmem>>, %arg6: memref<512x256xbf16, #tpu.memory_space<vmem>>, %arg7: memref<1x256xf32, #tpu.memory_space<vmem>>, %arg8: memref<256x128xbf16, #tpu.memory_space<vmem>>, %arg9: memref<1x128xf32, #tpu.memory_space<vmem>>, %arg10: memref<16x128xbf16, #tpu.memory_space<vmem>>) attributes {dimension_semantics = [#tpu.dimension_semantics<parallel>], iteration_bounds = array<i64: 1>, scalar_prefetch = 0 : i64, scratch_operands = 0 : i64, tpu.core_type = #tpu.core_type<tc>, window_params = [{transform_indices = @transform_0, window_bounds = array<i64: 16, 64>}, {pipeline_mode = #tpu.pipeline_mode<synchronous>, transform_indices = @transform_1, window_bounds = array<i64: 64, 128>}, {pipeline_mode = #tpu.pipeline_mode<synchronous>, transform_indices = @transform_2, window_bounds = array<i64: 1, 128>}, {pipeline_mode = #tpu.pipeline_mode<synchronous>, transform_indices = @transform_3, window_bounds = array<i64: 128, 512>}, {pipeline_mode = #tpu.pipeline_mode<synchronous>, transform_indices = @transform_4, window_bounds = array<i64: 1, 512>}, {pipeline_mode = #tpu.pipeline_mode<synchronous>, transform_indices = @transform_5, window_bounds = array<i64: 512, 256>}, {pipeline_mode = #tpu.pipeline_mode<synchronous>, transform_indices = @transform_6, window_bounds = array<i64: 1, 256>}, {pipeline_mode = #tpu.pipeline_mode<synchronous>, transform_indices = @transform_7, window_bounds = array<i64: 256, 128>}, {pipeline_mode = #tpu.pipeline_mode<synchronous>, transform_indices = @transform_8, window_bounds = array<i64: 1, 128>}, {transform_indices = @transform_9, window_bounds = array<i64: 16, 128>}]} {
    %c0 = arith.constant 0 : index
    %c0_0 = arith.constant 0 : index
    %0 = vector.load %arg1[%c0, %c0_0] : memref<16x64xf32, #tpu.memory_space<vmem>>, vector<16x64xf32>
    %1 = arith.truncf %0 : vector<16x64xf32> to vector<16x64xbf16>
    %c0_1 = arith.constant 0 : index
    %c0_2 = arith.constant 0 : index
    %2 = vector.load %arg2[%c0_1, %c0_2] : memref<64x128xbf16, #tpu.memory_space<vmem>>, vector<64x128xbf16>
    %cst = arith.constant dense<0.000000e+00> : vector<16x128xf32>
    %3 = tpu.matmul %1, %2, %cst {dimension_numbers = #tpu.dot_dimension_numbers<[1], [0], [0], [1], [0, 0, 1, 1], [], []>} : vector<16x64xbf16>, vector<64x128xbf16>, vector<16x128xf32> -> vector<16x128xf32>
    %c0_3 = arith.constant 0 : index
    %c0_4 = arith.constant 0 : index
    %4 = vector.load %arg3[%c0_3, %c0_4] : memref<1x128xf32, #tpu.memory_space<vmem>>, vector<1x128xf32>
    %5 = vector.broadcast %4 : vector<1x128xf32> to vector<16x128xf32>
    %6 = arith.addf %3, %5 : vector<16x128xf32>
    %cst_5 = arith.constant 0.000000e+00 : f32
    %7 = vector.broadcast %cst_5 : f32 to vector<16x128xf32>
    %8 = arith.maximumf %6, %7 : vector<16x128xf32>
    %9 = arith.truncf %8 : vector<16x128xf32> to vector<16x128xbf16>
    %c0_6 = arith.constant 0 : index
    %c0_7 = arith.constant 0 : index
    %10 = vector.load %arg4[%c0_6, %c0_7] : memref<128x512xbf16, #tpu.memory_space<vmem>>, vector<128x512xbf16>
    %cst_8 = arith.constant dense<0.000000e+00> : vector<16x512xf32>
    %11 = tpu.matmul %9, %10, %cst_8 {dimension_numbers = #tpu.dot_dimension_numbers<[1], [0], [0], [1], [0, 0, 1, 1], [], []>} : vector<16x128xbf16>, vector<128x512xbf16>, vector<16x512xf32> -> vector<16x512xf32>
    %c0_9 = arith.constant 0 : index
    %c0_10 = arith.constant 0 : index
    %12 = vector.load %arg5[%c0_9, %c0_10] : memref<1x512xf32, #tpu.memory_space<vmem>>, vector<1x512xf32>
    %13 = vector.broadcast %12 : vector<1x512xf32> to vector<16x512xf32>
    %14 = arith.addf %11, %13 : vector<16x512xf32>
    %cst_11 = arith.constant 0.000000e+00 : f32
    %15 = vector.broadcast %cst_11 : f32 to vector<16x512xf32>
    %16 = arith.cmpf ogt, %14, %15 : vector<16x512xf32>
    %cst_12 = arith.constant 0.00999999977 : f32
    %17 = vector.broadcast %cst_12 : f32 to vector<16x512xf32>
    %18 = arith.mulf %17, %14 : vector<16x512xf32>
    %19 = arith.select %16, %14, %18 : vector<16x512xi1>, vector<16x512xf32>
    %20 = arith.truncf %19 : vector<16x512xf32> to vector<16x512xbf16>
    %c0_13 = arith.constant 0 : index
    %c0_14 = arith.constant 0 : index
    %21 = vector.load %arg6[%c0_13, %c0_14] : memref<512x256xbf16, #tpu.memory_space<vmem>>, vector<512x256xbf16>
    %cst_15 = arith.constant dense<0.000000e+00> : vector<16x256xf32>
    %22 = tpu.matmul %20, %21, %cst_15 {dimension_numbers = #tpu.dot_dimension_numbers<[1], [0], [0], [1], [0, 0, 1, 1], [], []>} : vector<16x512xbf16>, vector<512x256xbf16>, vector<16x256xf32> -> vector<16x256xf32>
    %c0_16 = arith.constant 0 : index
    %c0_17 = arith.constant 0 : index
    %23 = vector.load %arg7[%c0_16, %c0_17] : memref<1x256xf32, #tpu.memory_space<vmem>>, vector<1x256xf32>
    %24 = vector.broadcast %23 : vector<1x256xf32> to vector<16x256xf32>
    %25 = arith.addf %22, %24 : vector<16x256xf32>
    %cst_18 = arith.constant 0.000000e+00 : f32
    %26 = vector.broadcast %cst_18 : f32 to vector<16x256xf32>
    %27 = arith.cmpf ogt, %25, %26 : vector<16x256xf32>
    %cst_19 = arith.constant 0.00999999977 : f32
    %28 = vector.broadcast %cst_19 : f32 to vector<16x256xf32>
    %29 = arith.mulf %28, %25 : vector<16x256xf32>
    %30 = arith.select %27, %25, %29 : vector<16x256xi1>, vector<16x256xf32>
    %31 = arith.truncf %30 : vector<16x256xf32> to vector<16x256xbf16>
    %c0_20 = arith.constant 0 : index
    %c0_21 = arith.constant 0 : index
    %32 = vector.load %arg8[%c0_20, %c0_21] : memref<256x128xbf16, #tpu.memory_space<vmem>>, vector<256x128xbf16>
    %cst_22 = arith.constant dense<0.000000e+00> : vector<16x128xf32>
    %33 = tpu.matmul %31, %32, %cst_22 {dimension_numbers = #tpu.dot_dimension_numbers<[1], [0], [0], [1], [0, 0, 1, 1], [], []>} : vector<16x256xbf16>, vector<256x128xbf16>, vector<16x128xf32> -> vector<16x128xf32>
    %c0_23 = arith.constant 0 : index
    %c0_24 = arith.constant 0 : index
    %34 = vector.load %arg9[%c0_23, %c0_24] : memref<1x128xf32, #tpu.memory_space<vmem>>, vector<1x128xf32>
    %35 = vector.broadcast %34 : vector<1x128xf32> to vector<16x128xf32>
    %36 = arith.addf %33, %35 : vector<16x128xf32>
    %37 = arith.truncf %36 : vector<16x128xf32> to vector<16x128xbf16>
    %c0_25 = arith.constant 0 : index
    %c0_26 = arith.constant 0 : index
    %38 = vector.load %arg10[%c0_25, %c0_26] : memref<16x128xbf16, #tpu.memory_space<vmem>>, vector<16x128xbf16>
    tpu.vector_store %arg10[%c0_25, %c0_26], %37 {strides = array<i32>} : memref<16x128xbf16, #tpu.memory_space<vmem>>, vector<16x128xbf16>,
    return
  }
  func.func @transform_0(%arg0: i32) -> (i32, i32) {
    %c0_i32 = arith.constant 0 : i32
    %c0_i32_0 = arith.constant 0 : i32
    return %arg0, %c0_i32 : i32, i32
  }
  func.func @transform_1(%arg0: i32) -> (i32, i32) {
    %c0_i32 = arith.constant 0 : i32
    %c0_i32_0 = arith.constant 0 : i32
    %c0_i32_1 = arith.constant 0 : i32
    return %c0_i32, %c0_i32_0 : i32, i32
  }
  func.func @transform_2(%arg0: i32) -> (i32, i32) {
    %c0_i32 = arith.constant 0 : i32
    %c0_i32_0 = arith.constant 0 : i32
    %c0_i32_1 = arith.constant 0 : i32
    return %c0_i32, %c0_i32_0 : i32, i32
  }
  func.func @transform_3(%arg0: i32) -> (i32, i32) {
    %c0_i32 = arith.constant 0 : i32
    %c0_i32_0 = arith.constant 0 : i32
    %c0_i32_1 = arith.constant 0 : i32
    return %c0_i32, %c0_i32_0 : i32, i32
  }
  func.func @transform_4(%arg0: i32) -> (i32, i32) {
    %c0_i32 = arith.constant 0 : i32
    %c0_i32_0 = arith.constant 0 : i32
    %c0_i32_1 = arith.constant 0 : i32
    return %c0_i32, %c0_i32_0 : i32, i32
  }
  func.func @transform_5(%arg0: i32) -> (i32, i32) {
    %c0_i32 = arith.constant 0 : i32
    %c0_i32_0 = arith.constant 0 : i32
    %c0_i32_1 = arith.constant 0 : i32
    return %c0_i32, %c0_i32_0 : i32, i32
  }
  func.func @transform_6(%arg0: i32) -> (i32, i32) {
    %c0_i32 = arith.constant 0 : i32
    %c0_i32_0 = arith.constant 0 : i32
    %c0_i32_1 = arith.constant 0 : i32
    return %c0_i32, %c0_i32_0 : i32, i32
  }
  func.func @transform_7(%arg0: i32) -> (i32, i32) {
    %c0_i32 = arith.constant 0 : i32
    %c0_i32_0 = arith.constant 0 : i32
    %c0_i32_1 = arith.constant 0 : i32
    return %c0_i32, %c0_i32_0 : i32, i32
  }
  func.func @transform_8(%arg0: i32) -> (i32, i32) {
    %c0_i32 = arith.constant 0 : i32
    %c0_i32_0 = arith.constant 0 : i32
    %c0_i32_1 = arith.constant 0 : i32
    return %c0_i32, %c0_i32_0 : i32, i32
  }
  func.func @transform_9(%arg0: i32) -> (i32, i32) {
    %c0_i32 = arith.constant 0 : i32
    %c0_i32_0 = arith.constant 0 : i32
    return %arg0, %c0_i32 : i32, i32
  }
}

</mosaic_0001>

<llo_original>
// kernel: tpu_custom_call.1
$region0: #{tpu_custom_call.1}
  #allocation0 [shape = 'u32[]', space=smem, size = 0x4, offset = 0x4, fixed_abs, tag = 'smem constant byte address 0x4 - core index']
  #allocation1 [shape = 'u32[144,128]{1,0:T(1,128)}', space=vmem, size = 0x12000, scoped, tag = 'internal scratch']
  %s0 = inlined_call_operand.hbm [shape: f32[16,64], index: 0, kind: input, shape index: {}]
  %s1 = inlined_call_operand.hbm [shape: bf16[64,128], index: 1, kind: input, shape index: {}]
  %s2 = inlined_call_operand.vmem [shape: f32[1,128], index: 2, kind: input, shape index: {}]
  %s3 = inlined_call_operand.hbm [shape: bf16[128,512], index: 3, kind: input, shape index: {}]
  %s4 = inlined_call_operand.vmem [shape: f32[1,512], index: 4, kind: input, shape index: {}]
  %s5 = inlined_call_operand.hbm [shape: bf16[512,256], index: 5, kind: input, shape index: {}]
  %s6 = inlined_call_operand.vmem [shape: f32[1,256], index: 6, kind: input, shape index: {}]
  %s7 = inlined_call_operand.hbm [shape: bf16[256,128], index: 7, kind: input, shape index: {}]
  %s8 = inlined_call_operand.vmem [shape: f32[1,128], index: 8, kind: input, shape index: {}]
  %s9 = inlined_call_operand.hbm [shape: bf16[16,128], index: 9, kind: output, shape index: {}]
  %s10 = sld [smem:[#allocation0]]
  $region66: #{tpu_custom_call.1} parent=0
    _
  %s12 = ssub.s32 1, %s10
  %s13 = scalar_select 0, %s12, %s10
  $region1: #{tpu_custom_call.1} parent=0
    #allocation2 [shape = 'u8[8192]{0}', space=vmem, size = 0x2000, scoped, tag = 'input window, operand 0, single buffered']
    #allocation3 [shape = 's32[1]{0}', space=sflag, size = 0x4, scoped, tag = 'scoped memory for tpu_custom_call.1']
    #allocation4 [shape = 's32[1]{0}', space=sflag, size = 0x4, scoped, tag = 'scoped memory for tpu_custom_call.1']
    #allocation5 [shape = 'u8[16384]{0}', space=vmem, size = 0x4000, scoped, tag = 'input window, operand 1, single buffered']
    #allocation6 [shape = 's32[1]{0}', space=sflag, size = 0x4, scoped, tag = 'scoped memory for tpu_custom_call.1']
    #allocation7 [shape = 'u8[131072]{0}', space=vmem, size = 0x20000, scoped, tag = 'input window, operand 3, single buffered']
    #allocation8 [shape = 'u8[262144]{0}', space=vmem, size = 0x40000, scoped, tag = 'input window, operand 5, single buffered']
    #allocation9 [shape = 's32[1]{0}', space=sflag, size = 0x4, scoped, tag = 'scoped memory for tpu_custom_call.1']
    #allocation10 [shape = 'u8[65536]{0}', space=vmem, size = 0x10000, scoped, tag = 'input window, operand 7, single buffered']
    #allocation11 [shape = 'u8[4096]{0}', space=vmem, size = 0x1000, scoped, tag = 'output window, operand 0, single buffered']
    %14 = vsyncpa [#allocation3], 0
    %15 = vsyncpa [#allocation6], 0
    %16 = vsyncpa [#allocation9], 0
    %17 = vsyncpa [#allocation4], 0
    // Predicated region
    $region2: #{tpu_custom_call.1} parent=1 // pred_check
      _
    $region3: #{tpu_custom_call.1} parent=1 // pred_check_branch
      %19 = sbr.rel (0) target = $region5
    $region4: #{tpu_custom_call.1} parent=1 // pred_region
      %s21 = ssub.s32 256, 256
      %22 = vsyncadd [#allocation3], %s21
      %s23 = sshll.u32 [#allocation2], 4
      %s24 = int_to_ptr.vmem [resolvable:$true] %s23
      %29 = dma.hbm_to_vmem [thread:$0]  %s0, 256, %s24, [#allocation3], 128, 128, 8
    $region5: #{tpu_custom_call.1} parent=1 // pred_fallthru
      _
    // Predicated region
    $region6: #{tpu_custom_call.1} parent=1 // pred_check
      _
    $region7: #{tpu_custom_call.1} parent=1 // pred_check_branch
      %31 = sbr.rel (0) target = $region9
    $region8: #{tpu_custom_call.1} parent=1 // pred_region
      %s33 = ssub.s32 512, 512
      %34 = vsyncadd [#allocation6], %s33
      %s35 = sshll.u32 [#allocation5], 4
      %s36 = int_to_ptr.vmem [resolvable:$true] %s35
      %41 = dma.hbm_to_vmem [thread:$0]  %s1, 512, %s36, [#allocation6], 64, 64, 4
    $region9: #{tpu_custom_call.1} parent=1 // pred_fallthru
      _
    // Predicated region
    $region10: #{tpu_custom_call.1} parent=1 // pred_check
      _
    $region11: #{tpu_custom_call.1} parent=1 // pred_check_branch
      %43 = sbr.rel (0) target = $region13
    $region12: #{tpu_custom_call.1} parent=1 // pred_region
      _
    $region13: #{tpu_custom_call.1} parent=1 // pred_fallthru
      _
    // Predicated region
    $region14: #{tpu_custom_call.1} parent=1 // pred_check
      _
    $region15: #{tpu_custom_call.1} parent=1 // pred_check_branch
      %45 = sbr.rel (0) target = $region17
    $region16: #{tpu_custom_call.1} parent=1 // pred_region
      %s47 = ssub.s32 4096, 4096
      %48 = vsyncadd [#allocation6], %s47
      %s49 = sshll.u32 [#allocation7], 4
      %s50 = int_to_ptr.vmem [resolvable:$true] %s49
      %55 = dma.hbm_to_vmem [thread:$0]  %s3, 4096, %s50, [#allocation6], 256, 256, 16
    $region17: #{tpu_custom_call.1} parent=1 // pred_fallthru
      _
    // Predicated region
    $region18: #{tpu_custom_call.1} parent=1 // pred_check
      _
    $region19: #{tpu_custom_call.1} parent=1 // pred_check_branch
      %57 = sbr.rel (0) target = $region21
    $region20: #{tpu_custom_call.1} parent=1 // pred_region
      _
    $region21: #{tpu_custom_call.1} parent=1 // pred_fallthru
      _
    // Predicated region
    $region22: #{tpu_custom_call.1} parent=1 // pred_check
      _
    $region23: #{tpu_custom_call.1} parent=1 // pred_check_branch
      %59 = sbr.rel (0) target = $region25
    $region24: #{tpu_custom_call.1} parent=1 // pred_region
      %s61 = ssub.s32 8192, 8192
      %62 = vsyncadd [#allocation9], %s61
      %s63 = sshll.u32 [#allocation8], 4
      %s64 = int_to_ptr.vmem [resolvable:$true] %s63
      %69 = dma.hbm_to_vmem [thread:$0]  %s5, 8192, %s64, [#allocation9], 128, 128, 8
    $region25: #{tpu_custom_call.1} parent=1 // pred_fallthru
      _
    // Predicated region
    $region26: #{tpu_custom_call.1} parent=1 // pred_check
      _
    $region27: #{tpu_custom_call.1} parent=1 // pred_check_branch
      %71 = sbr.rel (0) target = $region29
    $region28: #{tpu_custom_call.1} parent=1 // pred_region
      _
    $region29: #{tpu_custom_call.1} parent=1 // pred_fallthru
      _
    // Predicated region
    $region30: #{tpu_custom_call.1} parent=1 // pred_check
      _
    $region31: #{tpu_custom_call.1} parent=1 // pred_check_branch
      %73 = sbr.rel (0) target = $region33
    $region32: #{tpu_custom_call.1} parent=1 // pred_region
      %s75 = ssub.s32 2048, 2048
      %76 = vsyncadd [#allocation9], %s75
      %s77 = sshll.u32 [#allocation10], 4
      %s78 = int_to_ptr.vmem [resolvable:$true] %s77
      %83 = dma.hbm_to_vmem [thread:$0]  %s7, 2048, %s78, [#allocation9], 64, 64, 4
    $region33: #{tpu_custom_call.1} parent=1 // pred_fallthru
      _
    // Predicated region
    $region34: #{tpu_custom_call.1} parent=1 // pred_check
      _
    $region35: #{tpu_custom_call.1} parent=1 // pred_check_branch
      %85 = sbr.rel (0) target = $region37
    $region36: #{tpu_custom_call.1} parent=1 // pred_region
      _
    $region37: #{tpu_custom_call.1} parent=1 // pred_fallthru
      _
    // Predicated region
    $region38: #{tpu_custom_call.1} parent=1 // pred_check
      _
    $region39: #{tpu_custom_call.1} parent=1 // pred_check_branch
      %87 = sbr.rel (0) target = $region41
    $region40: #{tpu_custom_call.1} parent=1 // pred_region
      %88 = dma.done [#allocation3], 256
    $region41: #{tpu_custom_call.1} parent=1 // pred_fallthru
      _
    // Predicated region
    $region42: #{tpu_custom_call.1} parent=1 // pred_check
      _
    $region43: #{tpu_custom_call.1} parent=1 // pred_check_branch
      %90 = sbr.rel (0) target = $region45
    $region44: #{tpu_custom_call.1} parent=1 // pred_region
      %91 = dma.done [#allocation6], 512
    $region45: #{tpu_custom_call.1} parent=1 // pred_fallthru
      _
    // Predicated region
    $region46: #{tpu_custom_call.1} parent=1 // pred_check
      _
    $region47: #{tpu_custom_call.1} parent=1 // pred_check_branch
      %93 = sbr.rel (0) target = $region49
    $region48: #{tpu_custom_call.1} parent=1 // pred_region
      %94 = dma.done [#allocation6], 4096
    $region49: #{tpu_custom_call.1} parent=1 // pred_fallthru
      _
    // Predicated region
    $region50: #{tpu_custom_call.1} parent=1 // pred_check
      _
    $region51: #{tpu_custom_call.1} parent=1 // pred_check_branch
      %96 = sbr.rel (0) target = $region53
    $region52: #{tpu_custom_call.1} parent=1 // pred_region
      %97 = dma.done [#allocation9], 8192
    $region53: #{tpu_custom_call.1} parent=1 // pred_fallthru
      _
    // Predicated region
    $region54: #{tpu_custom_call.1} parent=1 // pred_check
      _
    $region55: #{tpu_custom_call.1} parent=1 // pred_check_branch
      %99 = sbr.rel (0) target = $region57
    $region56: #{tpu_custom_call.1} parent=1 // pred_region
      %100 = dma.done [#allocation9], 2048
    $region57: #{tpu_custom_call.1} parent=1 // pred_fallthru
      _
    %v102 = vld [vmem:[#allocation2] sm:$0xff]
    %v103 = vld [vmem:[#allocation2 + $0x8] sm:$0xff]
    %v104 = vpack.c.bf16 %v103, %v102
    %v105 = vld [vmem:[#allocation5] sm:$0xf]
    %v106 = vld [vmem:[#allocation5 + $0x4] sm:$0xf]
    %v107 = vld [vmem:[#allocation5 + $0x8] sm:$0xf]
    %v108 = vld [vmem:[#allocation5 + $0xc] sm:$0xf]
    %v109 = vld [vmem:[#allocation5 + $0x10] sm:$0xf]
    %v110 = vld [vmem:[#allocation5 + $0x14] sm:$0xf]
    %v111 = vld [vmem:[#allocation5 + $0x18] sm:$0xf]
    %v112 = vld [vmem:[#allocation5 + $0x1c] sm:$0xf]
    %v113 = vld [vmem:[%s2] sm:$0x1]
    %v115 = vlaneseq
    %v116 = vshrl.u32 %v115, 7
    %v117 = vsub.s32 0, %v116
    %v118 = vrot.slane %v113, %v117
    %v128 = vunpack.c.l.b16 %v105
    %v129 = vunpack.c.l.b16 %v106
    %v130 = vunpack.c.l.b16 %v107
    %v131 = vunpack.c.l.b16 %v108
    %v132 = vunpack.c.l.b16 %v109
    %v133 = vunpack.c.l.b16 %v110
    %v134 = vunpack.c.l.b16 %v111
    %v135 = vunpack.c.l.b16 %v112
    %v136 = vpack.c.b16 %v129, %v128
    %v137 = vpack.c.b16 %v131, %v130
    %v138 = vpack.c.b16 %v133, %v132
    %v139 = vpack.c.b16 %v135, %v134
    %vm144 = vcmask 523264
    %v146 = vsel %vm144, %v104, 0
    %148 = vmatprep.subr.bf16.mxu0 0
    %149 = vmatpush1.bf16.msra.mxu0 %v136
    %150 = vmatprep.subr.bf16.mxu0 0
    %151 = vmatpush1.bf16.msra.mxu0 %v137
    %152 = vmatprep.subr.bf16.mxu0 0
    %153 = vmatpush1.bf16.msra.mxu0 %v138
    %154 = vmatprep.subr.bf16.mxu0 0
    %155 = vmatpush1.bf16.msra.mxu0 %v139
    %156 = vmatprep.subr.bf16.mxu0 0
    %157 = vmatpush1.bf16.msra.mxu0 0
    %158 = vmatprep.subr.bf16.mxu0 0
    %159 = vmatpush1.bf16.msra.mxu0 0
    %160 = vmatprep.subr.bf16.mxu0 0
    %161 = vmatpush1.bf16.msra.mxu0 0
    %162 = vmatprep.subr.bf16.mxu0 0
    %163 = vmatpush1.bf16.msra.mxu0 0
    %164 = vmatprep.subr.bf16.mxu0 0
    %165 = vmatpush1.bf16.msra.mxu0 0
    %166 = vmatprep.subr.bf16.mxu0 0
    %167 = vmatpush1.bf16.msra.mxu0 0
    %168 = vmatprep.subr.bf16.mxu0 0
    %169 = vmatpush1.bf16.msra.mxu0 0
    %170 = vmatprep.subr.bf16.mxu0 0
    %171 = vmatpush1.bf16.msra.mxu0 0
    %172 = vmatprep.subr.bf16.mxu0 0
    %173 = vmatpush1.bf16.msra.mxu0 0
    %174 = vmatprep.subr.bf16.mxu0 0
    %175 = vmatpush1.bf16.msra.mxu0 0
    %176 = vmatprep.subr.bf16.mxu0 0
    %177 = vmatpush1.bf16.msra.mxu0 0
    %178 = vmatprep.subr.bf16.mxu0 0
    %179 = vmatpush1.bf16.msra.mxu0 0
    %180 = vmatprep.mubr.bf16.mxu0 0
    %181 = vmatmul.mubr.bf16.gmra.mrb[0].mxu0 %v146
    %v182 = vpop.f32.mrb[0].mxu0
    %v183 = vadd.f32 %v118, %v182
    %v184 = vpop.f32.mrb[0].mxu0
    %v185 = vpop.f32.mrb[0].mxu0
    %v186 = vadd.f32 %v118, %v185
    %v187 = vpop.f32.mrb[0].mxu0
    %188 = vdwg.mxu0
    %v189 = vmax.f32 %v183, 0.0
    %v190 = vmax.f32 %v186, 0.0
    %v191 = vpack.c.bf16 %v190, %v189
    %v192 = vld [vmem:[#allocation7] sm:$0xff]
    %v193 = vld [vmem:[#allocation7 + $0x8] sm:$0xff]
    %v194 = vld [vmem:[#allocation7 + $0x10] sm:$0xff]
    %v195 = vld [vmem:[#allocation7 + $0x18] sm:$0xff]
    %v196 = vld [vmem:[#allocation7 + $0x20] sm:$0xff]
    %v197 = vld [vmem:[#allocation7 + $0x28] sm:$0xff]
    %v198 = vld [vmem:[#allocation7 + $0x30] sm:$0xff]
    %v199 = vld [vmem:[#allocation7 + $0x38] sm:$0xff]
    %v200 = vld [vmem:[#allocation7 + $0x40] sm:$0xff]
    %v201 = vld [vmem:[#allocation7 + $0x48] sm:$0xff]
    %v202 = vld [vmem:[#allocation7 + $0x50] sm:$0xff]
    %v203 = vld [vmem:[#allocation7 + $0x58] sm:$0xff]
    %v204 = vld [vmem:[#allocation7 + $0x60] sm:$0xff]
    %v205 = vld [vmem:[#allocation7 + $0x68] sm:$0xff]
    %v206 = vld [vmem:[#allocation7 + $0x70] sm:$0xff]
    %v207 = vld [vmem:[#allocation7 + $0x78] sm:$0xff]
    %v208 = vld [vmem:[#allocation7 + $0x80] sm:$0xff]
    %v209 = vld [vmem:[#allocation7 + $0x88] sm:$0xff]
    %v210 = vld [vmem:[#allocation7 + $0x90] sm:$0xff]
    %v211 = vld [vmem:[#allocation7 + $0x98] sm:$0xff]
    %v212 = vld [vmem:[#allocation7 + $0xa0] sm:$0xff]
    %v213 = vld [vmem:[#allocation7 + $0xa8] sm:$0xff]
    %v214 = vld [vmem:[#allocation7 + $0xb0] sm:$0xff]
    %v215 = vld [vmem:[#allocation7 + $0xb8] sm:$0xff]
    %v216 = vld [vmem:[#allocation7 + $0xc0] sm:$0xff]
    %v217 = vld [vmem:[#allocation7 + $0xc8] sm:$0xff]
    %v218 = vld [vmem:[#allocation7 + $0xd0] sm:$0xff]
    %v219 = vld [vmem:[#allocation7 + $0xd8] sm:$0xff]
    %v220 = vld [vmem:[#allocation7 + $0xe0] sm:$0xff]
    %v221 = vld [vmem:[#allocation7 + $0xe8] sm:$0xff]
    %v222 = vld [vmem:[#allocation7 + $0xf0] sm:$0xff]
    %v223 = vld [vmem:[#allocation7 + $0xf8] sm:$0xff]
    %v224 = vld [vmem:[%s4] sm:$0xf]
    %v226 = vlaneseq
    %v227 = vshrl.u32 %v226, 7
    %v228 = vsub.s32 0, %v227
    %v229 = vrot.slane %v224, %v228
    %v230 = vlaneseq
    %v231 = vshrl.u32 %v230, 7
    %v232 = vsub.s32 1, %v231
    %v233 = vrot.slane %v224, %v232
    %v234 = vlaneseq
    %v235 = vshrl.u32 %v234, 7
    %v236 = vsub.s32 2, %v235
    %v237 = vrot.slane %v224, %v236
    %v238 = vlaneseq
    %v239 = vshrl.u32 %v238, 7
    %v240 = vsub.s32 3, %v239
    %v241 = vrot.slane %v224, %v240
    %v278 = vunpack.c.l.b16 %v192
    %v279 = vunpack.c.h.b16 %v192
    %v280 = vunpack.c.l.b16 %v193
    %v281 = vunpack.c.h.b16 %v193
    %v282 = vunpack.c.l.b16 %v194
    %v283 = vunpack.c.h.b16 %v194
    %v284 = vunpack.c.l.b16 %v195
    %v285 = vunpack.c.h.b16 %v195
    %v286 = vunpack.c.l.b16 %v196
    %v287 = vunpack.c.h.b16 %v196
    %v288 = vunpack.c.l.b16 %v197
    %v289 = vunpack.c.h.b16 %v197
    %v290 = vunpack.c.l.b16 %v198
    %v291 = vunpack.c.h.b16 %v198
    %v292 = vunpack.c.l.b16 %v199
    %v293 = vunpack.c.h.b16 %v199
    %v294 = vunpack.c.l.b16 %v200
    %v295 = vunpack.c.h.b16 %v200
    %v296 = vunpack.c.l.b16 %v201
    %v297 = vunpack.c.h.b16 %v201
    %v298 = vunpack.c.l.b16 %v202
    %v299 = vunpack.c.h.b16 %v202
    %v300 = vunpack.c.l.b16 %v203
    %v301 = vunpack.c.h.b16 %v203
    %v302 = vunpack.c.l.b16 %v204
    %v303 = vunpack.c.h.b16 %v204
    %v304 = vunpack.c.l.b16 %v205
    %v305 = vunpack.c.h.b16 %v205
    %v306 = vunpack.c.l.b16 %v206
    %v307 = vunpack.c.h.b16 %v206
    %v308 = vunpack.c.l.b16 %v207
    %v309 = vunpack.c.h.b16 %v207
    %v310 = vunpack.c.l.b16 %v208
    %v311 = vunpack.c.h.b16 %v208
    %v312 = vunpack.c.l.b16 %v209
    %v313 = vunpack.c.h.b16 %v209
    %v314 = vunpack.c.l.b16 %v210
    %v315 = vunpack.c.h.b16 %v210
    %v316 = vunpack.c.l.b16 %v211
    %v317 = vunpack.c.h.b16 %v211
    %v318 = vunpack.c.l.b16 %v212
    %v319 = vunpack.c.h.b16 %v212
    %v320 = vunpack.c.l.b16 %v213
    %v321 = vunpack.c.h.b16 %v213
    %v322 = vunpack.c.l.b16 %v214
    %v323 = vunpack.c.h.b16 %v214
    %v324 = vunpack.c.l.b16 %v215
    %v325 = vunpack.c.h.b16 %v215
    %v326 = vunpack.c.l.b16 %v216
    %v327 = vunpack.c.h.b16 %v216
    %v328 = vunpack.c.l.b16 %v217
    %v329 = vunpack.c.h.b16 %v217
    %v330 = vunpack.c.l.b16 %v218
    %v331 = vunpack.c.h.b16 %v218
    %v332 = vunpack.c.l.b16 %v219
    %v333 = vunpack.c.h.b16 %v219
    %v334 = vunpack.c.l.b16 %v220
    %v335 = vunpack.c.h.b16 %v220
    %v336 = vunpack.c.l.b16 %v221
    %v337 = vunpack.c.h.b16 %v221
    %v338 = vunpack.c.l.b16 %v222
    %v339 = vunpack.c.h.b16 %v222
    %v340 = vunpack.c.l.b16 %v223
    %v341 = vunpack.c.h.b16 %v223
    %v342 = vpack.c.b16 %v282, %v278
    %v343 = vpack.c.b16 %v283, %v279
    %v344 = vpack.c.b16 %v284, %v280
    %v345 = vpack.c.b16 %v285, %v281
    %v346 = vpack.c.b16 %v290, %v286
    %v347 = vpack.c.b16 %v291, %v287
    %v348 = vpack.c.b16 %v292, %v288
    %v349 = vpack.c.b16 %v293, %v289
    %v350 = vpack.c.b16 %v298, %v294
    %v351 = vpack.c.b16 %v299, %v295
    %v352 = vpack.c.b16 %v300, %v296
    %v353 = vpack.c.b16 %v301, %v297
    %v354 = vpack.c.b16 %v306, %v302
    %v355 = vpack.c.b16 %v307, %v303
    %v356 = vpack.c.b16 %v308, %v304
    %v357 = vpack.c.b16 %v309, %v305
    %v358 = vpack.c.b16 %v314, %v310
    %v359 = vpack.c.b16 %v315, %v311
    %v360 = vpack.c.b16 %v316, %v312
    %v361 = vpack.c.b16 %v317, %v313
    %v362 = vpack.c.b16 %v322, %v318
    %v363 = vpack.c.b16 %v323, %v319
    %v364 = vpack.c.b16 %v324, %v320
    %v365 = vpack.c.b16 %v325, %v321
    %v366 = vpack.c.b16 %v330, %v326
    %v367 = vpack.c.b16 %v331, %v327
    %v368 = vpack.c.b16 %v332, %v328
    %v369 = vpack.c.b16 %v333, %v329
    %v370 = vpack.c.b16 %v338, %v334
    %v371 = vpack.c.b16 %v339, %v335
    %v372 = vpack.c.b16 %v340, %v336
    %v373 = vpack.c.b16 %v341, %v337
    %406 = vmatprep.subr.bf16.mxu0 %v343
    %407 = vmatpush1.bf16.msra.mxu0 %v342
    %408 = vmatprep.subr.bf16.mxu0 %v347
    %409 = vmatpush1.bf16.msra.mxu0 %v346
    %410 = vmatprep.subr.bf16.mxu0 %v351
    %411 = vmatpush1.bf16.msra.mxu0 %v350
    %412 = vmatprep.subr.bf16.mxu0 %v355
    %413 = vmatpush1.bf16.msra.mxu0 %v354
    %414 = vmatprep.subr.bf16.mxu0 %v359
    %415 = vmatpush1.bf16.msra.mxu0 %v358
    %416 = vmatprep.subr.bf16.mxu0 %v363
    %417 = vmatpush1.bf16.msra.mxu0 %v362
    %418 = vmatprep.subr.bf16.mxu0 %v367
    %419 = vmatpush1.bf16.msra.mxu0 %v366
    %420 = vmatprep.subr.bf16.mxu0 %v371
    %421 = vmatpush1.bf16.msra.mxu0 %v370
    %422 = vmatprep.subr.bf16.mxu0 0
    %423 = vmatpush1.bf16.msra.mxu0 0
    %424 = vmatprep.subr.bf16.mxu0 0
    %425 = vmatpush1.bf16.msra.mxu0 0
    %426 = vmatprep.subr.bf16.mxu0 0
    %427 = vmatpush1.bf16.msra.mxu0 0
    %428 = vmatprep.subr.bf16.mxu0 0
    %429 = vmatpush1.bf16.msra.mxu0 0
    %430 = vmatprep.subr.bf16.mxu0 0
    %431 = vmatpush1.bf16.msra.mxu0 0
    %432 = vmatprep.subr.bf16.mxu0 0
    %433 = vmatpush1.bf16.msra.mxu0 0
    %434 = vmatprep.subr.bf16.mxu0 0
    %435 = vmatpush1.bf16.msra.mxu0 0
    %436 = vmatprep.subr.bf16.mxu0 0
    %437 = vmatpush1.bf16.msra.mxu0 0
    %438 = vmatprep.mubr.bf16.mxu0 0
    %439 = vmatmul.mubr.bf16.gmra.mrb[0].mxu0 %v191
    %v440 = vpop.f32.mrb[0].mxu0
    %v441 = vadd.f32 %v229, %v440
    %v442 = vpop.f32.mrb[0].mxu0
    %v443 = vadd.f32 %v233, %v442
    %v444 = vpop.f32.mrb[0].mxu0
    %v445 = vadd.f32 %v229, %v444
    %v446 = vpop.f32.mrb[0].mxu0
    %v447 = vadd.f32 %v233, %v446
    %448 = vdwg.mxu0
    %449 = vmatprep.subr.bf16.mxu0 %v345
    %450 = vmatpush1.bf16.msra.mxu0 %v344
    %451 = vmatprep.subr.bf16.mxu0 %v349
    %452 = vmatpush1.bf16.msra.mxu0 %v348
    %453 = vmatprep.subr.bf16.mxu0 %v353
    %454 = vmatpush1.bf16.msra.mxu0 %v352
    %455 = vmatprep.subr.bf16.mxu0 %v357
    %456 = vmatpush1.bf16.msra.mxu0 %v356
    %457 = vmatprep.subr.bf16.mxu0 %v361
    %458 = vmatpush1.bf16.msra.mxu0 %v360
    %459 = vmatprep.subr.bf16.mxu0 %v365
    %460 = vmatpush1.bf16.msra.mxu0 %v364
    %461 = vmatprep.subr.bf16.mxu0 %v369
    %462 = vmatpush1.bf16.msra.mxu0 %v368
    %463 = vmatprep.subr.bf16.mxu0 %v373
    %464 = vmatpush1.bf16.msra.mxu0 %v372
    %465 = vmatprep.subr.bf16.mxu0 0
    %466 = vmatpush1.bf16.msra.mxu0 0
    %467 = vmatprep.subr.bf16.mxu0 0
    %468 = vmatpush1.bf16.msra.mxu0 0
    %469 = vmatprep.subr.bf16.mxu0 0
    %470 = vmatpush1.bf16.msra.mxu0 0
    %471 = vmatprep.subr.bf16.mxu0 0
    %472 = vmatpush1.bf16.msra.mxu0 0
    %473 = vmatprep.subr.bf16.mxu0 0
    %474 = vmatpush1.bf16.msra.mxu0 0
    %475 = vmatprep.subr.bf16.mxu0 0
    %476 = vmatpush1.bf16.msra.mxu0 0
    %477 = vmatprep.subr.bf16.mxu0 0
    %478 = vmatpush1.bf16.msra.mxu0 0
    %479 = vmatprep.subr.bf16.mxu0 0
    %480 = vmatpush1.bf16.msra.mxu0 0
    %481 = vmatprep.mubr.bf16.mxu0 0
    %482 = vmatmul.mubr.bf16.gmra.mrb[0].mxu0 %v191
    %v483 = vpop.f32.mrb[0].mxu0
    %v484 = vadd.f32 %v237, %v483
    %v485 = vpop.f32.mrb[0].mxu0
    %v486 = vadd.f32 %v241, %v485
    %v487 = vpop.f32.mrb[0].mxu0
    %v488 = vadd.f32 %v237, %v487
    %v489 = vpop.f32.mrb[0].mxu0
    %v490 = vadd.f32 %v241, %v489
    %491 = vdwg.mxu0
    %vm492 = vcmp.gt.f32.partialorder %v441, 0.0
    %vm493 = vcmp.gt.f32.partialorder %v443, 0.0
    %vm494 = vcmp.gt.f32.partialorder %v484, 0.0
    %vm495 = vcmp.gt.f32.partialorder %v486, 0.0
    %vm496 = vcmp.gt.f32.partialorder %v445, 0.0
    %vm497 = vcmp.gt.f32.partialorder %v447, 0.0
    %vm498 = vcmp.gt.f32.partialorder %v488, 0.0
    %vm499 = vcmp.gt.f32.partialorder %v490, 0.0
    %v500 = vmul.f32 %v441, 0.01
    %v501 = vmul.f32 %v443, 0.01
    %v502 = vmul.f32 %v484, 0.01
    %v503 = vmul.f32 %v486, 0.01
    %v504 = vmul.f32 %v445, 0.01
    %v505 = vmul.f32 %v447, 0.01
    %v506 = vmul.f32 %v488, 0.01
    %v507 = vmul.f32 %v490, 0.01
    %v508 = vsel %vm492, %v441, %v500
    %v509 = vsel %vm493, %v443, %v501
    %v510 = vsel %vm494, %v484, %v502
    %v511 = vsel %vm495, %v486, %v503
    %v512 = vsel %vm496, %v445, %v504
    %v513 = vsel %vm497, %v447, %v505
    %v514 = vsel %vm498, %v488, %v506
    %v515 = vsel %vm499, %v490, %v507
    %v516 = vpack.c.bf16 %v512, %v508
    %v517 = vpack.c.bf16 %v513, %v509
    %v518 = vpack.c.bf16 %v514, %v510
    %v519 = vpack.c.bf16 %v515, %v511
    %v520 = vld [vmem:[#allocation8] sm:$0xff]
    %v521 = vld [vmem:[#allocation8 + $0x8] sm:$0xff]
    %v522 = vld [vmem:[#allocation8 + $0x10] sm:$0xff]
    %v523 = vld [vmem:[#allocation8 + $0x18] sm:$0xff]
    %v524 = vld [vmem:[#allocation8 + $0x20] sm:$0xff]
    %v525 = vld [vmem:[#allocation8 + $0x28] sm:$0xff]
    %v526 = vld [vmem:[#allocation8 + $0x30] sm:$0xff]
    %v527 = vld [vmem:[#allocation8 + $0x38] sm:$0xff]
    %v528 = vld [vmem:[#allocation8 + $0x40] sm:$0xff]
    %v529 = vld [vmem:[#allocation8 + $0x48] sm:$0xff]
    %v530 = vld [vmem:[#allocation8 + $0x50] sm:$0xff]
    %v531 = vld [vmem:[#allocation8 + $0x58] sm:$0xff]
    %v532 = vld [vmem:[#allocation8 + $0x60] sm:$0xff]
    %v533 = vld [vmem:[#allocation8 + $0x68] sm:$0xff]
    %v534 = vld [vmem:[#allocation8 + $0x70] sm:$0xff]
    %v535 = vld [vmem:[#allocation8 + $0x78] sm:$0xff]
    %v536 = vld [vmem:[#allocation8 + $0x80] sm:$0xff]
    %v537 = vld [vmem:[#allocation8 + $0x88] sm:$0xff]
    %v538 = vld [vmem:[#allocation8 + $0x90] sm:$0xff]
    %v539 = vld [vmem:[#allocation8 + $0x98] sm:$0xff]
    %v540 = vld [vmem:[#allocation8 + $0xa0] sm:$0xff]
    %v541 = vld [vmem:[#allocation8 + $0xa8] sm:$0xff]
    %v542 = vld [vmem:[#allocation8 + $0xb0] sm:$0xff]
    %v543 = vld [vmem:[#allocation8 + $0xb8] sm:$0xff]
    %v544 = vld [vmem:[#allocation8 + $0xc0] sm:$0xff]
    %v545 = vld [vmem:[#allocation8 + $0xc8] sm:$0xff]
    %v546 = vld [vmem:[#allocation8 + $0xd0] sm:$0xff]
    %v547 = vld [vmem:[#allocation8 + $0xd8] sm:$0xff]
    %v548 = vld [vmem:[#allocation8 + $0xe0] sm:$0xff]
    %v549 = vld [vmem:[#allocation8 + $0xe8] sm:$0xff]
    %v550 = vld [vmem:[#allocation8 + $0xf0] sm:$0xff]
    %v551 = vld [vmem:[#allocation8 + $0xf8] sm:$0xff]
    %v552 = vld [vmem:[#allocation8 + $0x100] sm:$0xff]
    %v553 = vld [vmem:[#allocation8 + $0x108] sm:$0xff]
    %v554 = vld [vmem:[#allocation8 + $0x110] sm:$0xff]
    %v555 = vld [vmem:[#allocation8 + $0x118] sm:$0xff]
    %v556 = vld [vmem:[#allocation8 + $0x120] sm:$0xff]
    %v557 = vld [vmem:[#allocation8 + $0x128] sm:$0xff]
    %v558 = vld [vmem:[#allocation8 + $0x130] sm:$0xff]
    %v559 = vld [vmem:[#allocation8 + $0x138] sm:$0xff]
    %v560 = vld [vmem:[#allocation8 + $0x140] sm:$0xff]
    %v561 = vld [vmem:[#allocation8 + $0x148] sm:$0xff]
    %v562 = vld [vmem:[#allocation8 + $0x150] sm:$0xff]
    %v563 = vld [vmem:[#allocation8 + $0x158] sm:$0xff]
    %v564 = vld [vmem:[#allocation8 + $0x160] sm:$0xff]
    %v565 = vld [vmem:[#allocation8 + $0x168] sm:$0xff]
    %v566 = vld [vmem:[#allocation8 + $0x170] sm:$0xff]
    %v567 = vld [vmem:[#allocation8 + $0x178] sm:$0xff]
    %v568 = vld [vmem:[#allocation8 + $0x180] sm:$0xff]
    %v569 = vld [vmem:[#allocation8 + $0x188] sm:$0xff]
    %v570 = vld [vmem:[#allocation8 + $0x190] sm:$0xff]
    %v571 = vld [vmem:[#allocation8 + $0x198] sm:$0xff]
    %v572 = vld [vmem:[#allocation8 + $0x1a0] sm:$0xff]
    %v573 = vld [vmem:[#allocation8 + $0x1a8] sm:$0xff]
    %v574 = vld [vmem:[#allocation8 + $0x1b0] sm:$0xff]
    %v575 = vld [vmem:[#allocation8 + $0x1b8] sm:$0xff]
    %v576 = vld [vmem:[#allocation8 + $0x1c0] sm:$0xff]
    %v577 = vld [vmem:[#allocation8 + $0x1c8] sm:$0xff]
    %v578 = vld [vmem:[#allocation8 + $0x1d0] sm:$0xff]
    %v579 = vld [vmem:[#allocation8 + $0x1d8] sm:$0xff]
    %v580 = vld [vmem:[#allocation8 + $0x1e0] sm:$0xff]
    %v581 = vld [vmem:[#allocation8 + $0x1e8] sm:$0xff]
    %v582 = vld [vmem:[#allocation8 + $0x1f0] sm:$0xff]
    %v583 = vld [vmem:[#allocation8 + $0x1f8] sm:$0xff]
    %v584 = vld [vmem:[%s6] sm:$0x3]
    %v586 = vlaneseq
    %v587 = vshrl.u32 %v586, 7
    %v588 = vsub.s32 0, %v587
    %v589 = vrot.slane %v584, %v588
    %v590 = vlaneseq
    %v591 = vshrl.u32 %v590, 7
    %v592 = vsub.s32 1, %v591
    %v593 = vrot.slane %v584, %v592
    %v660 = vunpack.c.l.b16 %v520
    %v661 = vunpack.c.h.b16 %v520
    %v662 = vunpack.c.l.b16 %v521
    %v663 = vunpack.c.h.b16 %v521
    %v664 = vunpack.c.l.b16 %v522
    %v665 = vunpack.c.h.b16 %v522
    %v666 = vunpack.c.l.b16 %v523
    %v667 = vunpack.c.h.b16 %v523
    %v668 = vunpack.c.l.b16 %v524
    %v669 = vunpack.c.h.b16 %v524
    %v670 = vunpack.c.l.b16 %v525
    %v671 = vunpack.c.h.b16 %v525
    %v672 = vunpack.c.l.b16 %v526
    %v673 = vunpack.c.h.b16 %v526
    %v674 = vunpack.c.l.b16 %v527
    %v675 = vunpack.c.h.b16 %v527
    %v676 = vunpack.c.l.b16 %v528
    %v677 = vunpack.c.h.b16 %v528
    %v678 = vunpack.c.l.b16 %v529
    %v679 = vunpack.c.h.b16 %v529
    %v680 = vunpack.c.l.b16 %v530
    %v681 = vunpack.c.h.b16 %v530
    %v682 = vunpack.c.l.b16 %v531
    %v683 = vunpack.c.h.b16 %v531
    %v684 = vunpack.c.l.b16 %v532
    %v685 = vunpack.c.h.b16 %v532
    %v686 = vunpack.c.l.b16 %v533
    %v687 = vunpack.c.h.b16 %v533
    %v688 = vunpack.c.l.b16 %v534
    %v689 = vunpack.c.h.b16 %v534
    %v690 = vunpack.c.l.b16 %v535
    %v691 = vunpack.c.h.b16 %v535
    %v692 = vunpack.c.l.b16 %v536
    %v693 = vunpack.c.h.b16 %v536
    %v694 = vunpack.c.l.b16 %v537
    %v695 = vunpack.c.h.b16 %v537
    %v696 = vunpack.c.l.b16 %v538
    %v697 = vunpack.c.h.b16 %v538
    %v698 = vunpack.c.l.b16 %v539
    %v699 = vunpack.c.h.b16 %v539
    %v700 = vunpack.c.l.b16 %v540
    %v701 = vunpack.c.h.b16 %v540
    %v702 = vunpack.c.l.b16 %v541
    %v703 = vunpack.c.h.b16 %v541
    %v704 = vunpack.c.l.b16 %v542
    %v705 = vunpack.c.h.b16 %v542
    %v706 = vunpack.c.l.b16 %v543
    %v707 = vunpack.c.h.b16 %v543
    %v708 = vunpack.c.l.b16 %v544
    %v709 = vunpack.c.h.b16 %v544
    %v710 = vunpack.c.l.b16 %v545
    %v711 = vunpack.c.h.b16 %v545
    %v712 = vunpack.c.l.b16 %v546
    %v713 = vunpack.c.h.b16 %v546
    %v714 = vunpack.c.l.b16 %v547
    %v715 = vunpack.c.h.b16 %v547
    %v716 = vunpack.c.l.b16 %v548
    %v717 = vunpack.c.h.b16 %v548
    %v718 = vunpack.c.l.b16 %v549
    %v719 = vunpack.c.h.b16 %v549
    %v720 = vunpack.c.l.b16 %v550
    %v721 = vunpack.c.h.b16 %v550
    %v722 = vunpack.c.l.b16 %v551
    %v723 = vunpack.c.h.b16 %v551
    %v724 = vunpack.c.l.b16 %v552
    %v725 = vunpack.c.h.b16 %v552
    %v726 = vunpack.c.l.b16 %v553
    %v727 = vunpack.c.h.b16 %v553
    %v728 = vunpack.c.l.b16 %v554
    %v729 = vunpack.c.h.b16 %v554
    %v730 = vunpack.c.l.b16 %v555
    %v731 = vunpack.c.h.b16 %v555
    %v732 = vunpack.c.l.b16 %v556
    %v733 = vunpack.c.h.b16 %v556
    %v734 = vunpack.c.l.b16 %v557
    %v735 = vunpack.c.h.b16 %v557
    %v736 = vunpack.c.l.b16 %v558
    %v737 = vunpack.c.h.b16 %v558
    %v738 = vunpack.c.l.b16 %v559
    %v739 = vunpack.c.h.b16 %v559
    %v740 = vunpack.c.l.b16 %v560
    %v741 = vunpack.c.h.b16 %v560
    %v742 = vunpack.c.l.b16 %v561
    %v743 = vunpack.c.h.b16 %v561
    %v744 = vunpack.c.l.b16 %v562
    %v745 = vunpack.c.h.b16 %v562
    %v746 = vunpack.c.l.b16 %v563
    %v747 = vunpack.c.h.b16 %v563
    %v748 = vunpack.c.l.b16 %v564
    %v749 = vunpack.c.h.b16 %v564
    %v750 = vunpack.c.l.b16 %v565
    %v751 = vunpack.c.h.b16 %v565
    %v752 = vunpack.c.l.b16 %v566
    %v753 = vunpack.c.h.b16 %v566
    %v754 = vunpack.c.l.b16 %v567
    %v755 = vunpack.c.h.b16 %v567
    %v756 = vunpack.c.l.b16 %v568
    %v757 = vunpack.c.h.b16 %v568
    %v758 = vunpack.c.l.b16 %v569
    %v759 = vunpack.c.h.b16 %v569
    %v760 = vunpack.c.l.b16 %v570
    %v761 = vunpack.c.h.b16 %v570
    %v762 = vunpack.c.l.b16 %v571
    %v763 = vunpack.c.h.b16 %v571
    %v764 = vunpack.c.l.b16 %v572
    %v765 = vunpack.c.h.b16 %v572
    %v766 = vunpack.c.l.b16 %v573
    %v767 = vunpack.c.h.b16 %v573
    %v768 = vunpack.c.l.b16 %v574
    %v769 = vunpack.c.h.b16 %v574
    %v770 = vunpack.c.l.b16 %v575
    %v771 = vunpack.c.h.b16 %v575
    %v772 = vunpack.c.l.b16 %v576
    %v773 = vunpack.c.h.b16 %v576
    %v774 = vunpack.c.l.b16 %v577
    %v775 = vunpack.c.h.b16 %v577
    %v776 = vunpack.c.l.b16 %v578
    %v777 = vunpack.c.h.b16 %v578
    %v778 = vunpack.c.l.b16 %v579
    %v779 = vunpack.c.h.b16 %v579
    %v780 = vunpack.c.l.b16 %v580
    %v781 = vunpack.c.h.b16 %v580
    %v782 = vunpack.c.l.b16 %v581
    %v783 = vunpack.c.h.b16 %v581
    %v784 = vunpack.c.l.b16 %v582
    %v785 = vunpack.c.h.b16 %v582
    %v786 = vunpack.c.l.b16 %v583
    %v787 = vunpack.c.h.b16 %v583
    %v788 = vpack.c.b16 %v662, %v660
    %v789 = vpack.c.b16 %v663, %v661
    %v790 = vpack.c.b16 %v666, %v664
    %v791 = vpack.c.b16 %v667, %v665
    %v792 = vpack.c.b16 %v670, %v668
    %v793 = vpack.c.b16 %v671, %v669
    %v794 = vpack.c.b16 %v674, %v672
    %v795 = vpack.c.b16 %v675, %v673
    %v796 = vpack.c.b16 %v678, %v676
    %v797 = vpack.c.b16 %v679, %v677
    %v798 = vpack.c.b16 %v682, %v680
    %v799 = vpack.c.b16 %v683, %v681
    %v800 = vpack.c.b16 %v686, %v684
    %v801 = vpack.c.b16 %v687, %v685
    %v802 = vpack.c.b16 %v690, %v688
    %v803 = vpack.c.b16 %v691, %v689
    %v804 = vpack.c.b16 %v694, %v692
    %v805 = vpack.c.b16 %v695, %v693
    %v806 = vpack.c.b16 %v698, %v696
    %v807 = vpack.c.b16 %v699, %v697
    %v808 = vpack.c.b16 %v702, %v700
    %v809 = vpack.c.b16 %v703, %v701
    %v810 = vpack.c.b16 %v706, %v704
    %v811 = vpack.c.b16 %v707, %v705
    %v812 = vpack.c.b16 %v710, %v708
    %v813 = vpack.c.b16 %v711, %v709
    %v814 = vpack.c.b16 %v714, %v712
    %v815 = vpack.c.b16 %v715, %v713
    %v816 = vpack.c.b16 %v718, %v716
    %v817 = vpack.c.b16 %v719, %v717
    %v818 = vpack.c.b16 %v722, %v720
    %v819 = vpack.c.b16 %v723, %v721
    %v820 = vpack.c.b16 %v726, %v724
    %v821 = vpack.c.b16 %v727, %v725
    %v822 = vpack.c.b16 %v730, %v728
    %v823 = vpack.c.b16 %v731, %v729
    %v824 = vpack.c.b16 %v734, %v732
    %v825 = vpack.c.b16 %v735, %v733
    %v826 = vpack.c.b16 %v738, %v736
    %v827 = vpack.c.b16 %v739, %v737
    %v828 = vpack.c.b16 %v742, %v740
    %v829 = vpack.c.b16 %v743, %v741
    %v830 = vpack.c.b16 %v746, %v744
    %v831 = vpack.c.b16 %v747, %v745
    %v832 = vpack.c.b16 %v750, %v748
    %v833 = vpack.c.b16 %v751, %v749
    %v834 = vpack.c.b16 %v754, %v752
    %v835 = vpack.c.b16 %v755, %v753
    %v836 = vpack.c.b16 %v758, %v756
    %v837 = vpack.c.b16 %v759, %v757
    %v838 = vpack.c.b16 %v762, %v760
    %v839 = vpack.c.b16 %v763, %v761
    %v840 = vpack.c.b16 %v766, %v764
    %v841 = vpack.c.b16 %v767, %v765
    %v842 = vpack.c.b16 %v770, %v768
    %v843 = vpack.c.b16 %v771, %v769
    %v844 = vpack.c.b16 %v774, %v772
    %v845 = vpack.c.b16 %v775, %v773
    %v846 = vpack.c.b16 %v778, %v776
    %v847 = vpack.c.b16 %v779, %v777
    %v848 = vpack.c.b16 %v782, %v780
    %v849 = vpack.c.b16 %v783, %v781
    %v850 = vpack.c.b16 %v786, %v784
    %v851 = vpack.c.b16 %v787, %v785
    %916 = vmatprep.subr.bf16.mxu0 %v789
    %917 = vmatpush1.bf16.msra.mxu0 %v788
    %918 = vmatprep.subr.bf16.mxu0 %v791
    %919 = vmatpush1.bf16.msra.mxu0 %v790
    %920 = vmatprep.subr.bf16.mxu0 %v793
    %921 = vmatpush1.bf16.msra.mxu0 %v792
    %922 = vmatprep.subr.bf16.mxu0 %v795
    %923 = vmatpush1.bf16.msra.mxu0 %v794
    %924 = vmatprep.subr.bf16.mxu0 %v797
    %925 = vmatpush1.bf16.msra.mxu0 %v796
    %926 = vmatprep.subr.bf16.mxu0 %v799
    %927 = vmatpush1.bf16.msra.mxu0 %v798
    %928 = vmatprep.subr.bf16.mxu0 %v801
    %929 = vmatpush1.bf16.msra.mxu0 %v800
    %930 = vmatprep.subr.bf16.mxu0 %v803
    %931 = vmatpush1.bf16.msra.mxu0 %v802
    %932 = vmatprep.subr.bf16.mxu0 %v805
    %933 = vmatpush1.bf16.msra.mxu0 %v804
    %934 = vmatprep.subr.bf16.mxu0 %v807
    %935 = vmatpush1.bf16.msra.mxu0 %v806
    %936 = vmatprep.subr.bf16.mxu0 %v809
    %937 = vmatpush1.bf16.msra.mxu0 %v808
    %938 = vmatprep.subr.bf16.mxu0 %v811
    %939 = vmatpush1.bf16.msra.mxu0 %v810
    %940 = vmatprep.subr.bf16.mxu0 %v813
    %941 = vmatpush1.bf16.msra.mxu0 %v812
    %942 = vmatprep.subr.bf16.mxu0 %v815
    %943 = vmatpush1.bf16.msra.mxu0 %v814
    %944 = vmatprep.subr.bf16.mxu0 %v817
    %945 = vmatpush1.bf16.msra.mxu0 %v816
    %946 = vmatprep.subr.bf16.mxu0 %v819
    %947 = vmatpush1.bf16.msra.mxu0 %v818
    %948 = vmatprep.mubr.bf16.mxu0 %v517
    %949 = vmatmul.mubr.bf16.gmra.mrb[0].mxu0 %v516
    %v950 = vpop.f32.mrb[0].mxu0
    %v951 = vadd.f32 %v589, %v950
    %v952 = vpop.f32.mrb[0].mxu0
    %v953 = vadd.f32 %v593, %v952
    %v954 = vpop.f32.mrb[0].mxu0
    %v955 = vadd.f32 %v589, %v954
    %v956 = vpop.f32.mrb[0].mxu0
    %v957 = vadd.f32 %v593, %v956
    %958 = vdwg.mxu0
    %959 = vmatprep.subr.bf16.mxu0 %v821
    %960 = vmatpush1.bf16.msra.mxu0 %v820
    %961 = vmatprep.subr.bf16.mxu0 %v823
    %962 = vmatpush1.bf16.msra.mxu0 %v822
    %963 = vmatprep.subr.bf16.mxu0 %v825
    %964 = vmatpush1.bf16.msra.mxu0 %v824
    %965 = vmatprep.subr.bf16.mxu0 %v827
    %966 = vmatpush1.bf16.msra.mxu0 %v826
    %967 = vmatprep.subr.bf16.mxu0 %v829
    %968 = vmatpush1.bf16.msra.mxu0 %v828
    %969 = vmatprep.subr.bf16.mxu0 %v831
    %970 = vmatpush1.bf16.msra.mxu0 %v830
    %971 = vmatprep.subr.bf16.mxu0 %v833
    %972 = vmatpush1.bf16.msra.mxu0 %v832
    %973 = vmatprep.subr.bf16.mxu0 %v835
    %974 = vmatpush1.bf16.msra.mxu0 %v834
    %975 = vmatprep.subr.bf16.mxu0 %v837
    %976 = vmatpush1.bf16.msra.mxu0 %v836
    %977 = vmatprep.subr.bf16.mxu0 %v839
    %978 = vmatpush1.bf16.msra.mxu0 %v838
    %979 = vmatprep.subr.bf16.mxu0 %v841
    %980 = vmatpush1.bf16.msra.mxu0 %v840
    %981 = vmatprep.subr.bf16.mxu0 %v843
    %982 = vmatpush1.bf16.msra.mxu0 %v842
    %983 = vmatprep.subr.bf16.mxu0 %v845
    %984 = vmatpush1.bf16.msra.mxu0 %v844
    %985 = vmatprep.subr.bf16.mxu0 %v847
    %986 = vmatpush1.bf16.msra.mxu0 %v846
    %987 = vmatprep.subr.bf16.mxu0 %v849
    %988 = vmatpush1.bf16.msra.mxu0 %v848
    %989 = vmatprep.subr.bf16.mxu0 %v851
    %990 = vmatpush1.bf16.msra.mxu0 %v850
    %991 = vmatprep.mubr.bf16.mxu0 %v519
    %992 = vmatmul.mubr.bf16.gmra.mrb[0].mxu0 %v518
    %v993 = vpop.f32.mrb[0].mxu0
    %v994 = vadd.f32 %v951, %v993
    %v995 = vpop.f32.mrb[0].mxu0
    %v996 = vadd.f32 %v953, %v995
    %v997 = vpop.f32.mrb[0].mxu0
    %v998 = vadd.f32 %v955, %v997
    %v999 = vpop.f32.mrb[0].mxu0
    %v1000 = vadd.f32 %v957, %v999
    %1001 = vdwg.mxu0
    %vm1002 = vcmp.gt.f32.partialorder %v994, 0.0
    %vm1003 = vcmp.gt.f32.partialorder %v996, 0.0
    %vm1004 = vcmp.gt.f32.partialorder %v998, 0.0
    %vm1005 = vcmp.gt.f32.partialorder %v1000, 0.0
    %v1006 = vmul.f32 %v994, 0.01
    %v1007 = vmul.f32 %v996, 0.01
    %v1008 = vmul.f32 %v998, 0.01
    %v1009 = vmul.f32 %v1000, 0.01
    %v1010 = vsel %vm1002, %v994, %v1006
    %v1011 = vsel %vm1003, %v996, %v1007
    %v1012 = vsel %vm1004, %v998, %v1008
    %v1013 = vsel %vm1005, %v1000, %v1009
    %v1014 = vpack.c.bf16 %v1012, %v1010
    %v1015 = vpack.c.bf16 %v1013, %v1011
    %v1016 = vld [vmem:[#allocation10] sm:$0xf]
    %v1017 = vld [vmem:[#allocation10 + $0x4] sm:$0xf]
    %v1018 = vld [vmem:[#allocation10 + $0x8] sm:$0xf]
    %v1019 = vld [vmem:[#allocation10 + $0xc] sm:$0xf]
    %v1020 = vld [vmem:[#allocation10 + $0x10] sm:$0xf]
    %v1021 = vld [vmem:[#allocation10 + $0x14] sm:$0xf]
    %v1022 = vld [vmem:[#allocation10 + $0x18] sm:$0xf]
    %v1023 = vld [vmem:[#allocation10 + $0x1c] sm:$0xf]
    %v1024 = vld [vmem:[#allocation10 + $0x20] sm:$0xf]
    %v1025 = vld [vmem:[#allocation10 + $0x24] sm:$0xf]
    %v1026 = vld [vmem:[#allocation10 + $0x28] sm:$0xf]
    %v1027 = vld [vmem:[#allocation10 + $0x2c] sm:$0xf]
    %v1028 = vld [vmem:[#allocation10 + $0x30] sm:$0xf]
    %v1029 = vld [vmem:[#allocation10 + $0x34] sm:$0xf]
    %v1030 = vld [vmem:[#allocation10 + $0x38] sm:$0xf]
    %v1031 = vld [vmem:[#allocation10 + $0x3c] sm:$0xf]
    %v1032 = vld [vmem:[#allocation10 + $0x40] sm:$0xf]
    %v1033 = vld [vmem:[#allocation10 + $0x44] sm:$0xf]
    %v1034 = vld [vmem:[#allocation10 + $0x48] sm:$0xf]
    %v1035 = vld [vmem:[#allocation10 + $0x4c] sm:$0xf]
    %v1036 = vld [vmem:[#allocation10 + $0x50] sm:$0xf]
    %v1037 = vld [vmem:[#allocation10 + $0x54] sm:$0xf]
    %v1038 = vld [vmem:[#allocation10 + $0x58] sm:$0xf]
    %v1039 = vld [vmem:[#allocation10 + $0x5c] sm:$0xf]
    %v1040 = vld [vmem:[#allocation10 + $0x60] sm:$0xf]
    %v1041 = vld [vmem:[#allocation10 + $0x64] sm:$0xf]
    %v1042 = vld [vmem:[#allocation10 + $0x68] sm:$0xf]
    %v1043 = vld [vmem:[#allocation10 + $0x6c] sm:$0xf]
    %v1044 = vld [vmem:[#allocation10 + $0x70] sm:$0xf]
    %v1045 = vld [vmem:[#allocation10 + $0x74] sm:$0xf]
    %v1046 = vld [vmem:[#allocation10 + $0x78] sm:$0xf]
    %v1047 = vld [vmem:[#allocation10 + $0x7c] sm:$0xf]
    %v1048 = vld [vmem:[%s8] sm:$0x1]
    %v1050 = vlaneseq
    %v1051 = vshrl.u32 %v1050, 7
    %v1052 = vsub.s32 0, %v1051
    %v1053 = vrot.slane %v1048, %v1052
    %v1087 = vunpack.c.l.b16 %v1016
    %v1088 = vunpack.c.l.b16 %v1017
    %v1089 = vunpack.c.l.b16 %v1018
    %v1090 = vunpack.c.l.b16 %v1019
    %v1091 = vunpack.c.l.b16 %v1020
    %v1092 = vunpack.c.l.b16 %v1021
    %v1093 = vunpack.c.l.b16 %v1022
    %v1094 = vunpack.c.l.b16 %v1023
    %v1095 = vunpack.c.l.b16 %v1024
    %v1096 = vunpack.c.l.b16 %v1025
    %v1097 = vunpack.c.l.b16 %v1026
    %v1098 = vunpack.c.l.b16 %v1027
    %v1099 = vunpack.c.l.b16 %v1028
    %v1100 = vunpack.c.l.b16 %v1029
    %v1101 = vunpack.c.l.b16 %v1030
    %v1102 = vunpack.c.l.b16 %v1031
    %v1103 = vunpack.c.l.b16 %v1032
    %v1104 = vunpack.c.l.b16 %v1033
    %v1105 = vunpack.c.l.b16 %v1034
    %v1106 = vunpack.c.l.b16 %v1035
    %v1107 = vunpack.c.l.b16 %v1036
    %v1108 = vunpack.c.l.b16 %v1037
    %v1109 = vunpack.c.l.b16 %v1038
    %v1110 = vunpack.c.l.b16 %v1039
    %v1111 = vunpack.c.l.b16 %v1040
    %v1112 = vunpack.c.l.b16 %v1041
    %v1113 = vunpack.c.l.b16 %v1042
    %v1114 = vunpack.c.l.b16 %v1043
    %v1115 = vunpack.c.l.b16 %v1044
    %v1116 = vunpack.c.l.b16 %v1045
    %v1117 = vunpack.c.l.b16 %v1046
    %v1118 = vunpack.c.l.b16 %v1047
    %v1119 = vpack.c.b16 %v1088, %v1087
    %v1120 = vpack.c.b16 %v1090, %v1089
    %v1121 = vpack.c.b16 %v1092, %v1091
    %v1122 = vpack.c.b16 %v1094, %v1093
    %v1123 = vpack.c.b16 %v1096, %v1095
    %v1124 = vpack.c.b16 %v1098, %v1097
    %v1125 = vpack.c.b16 %v1100, %v1099
    %v1126 = vpack.c.b16 %v1102, %v1101
    %v1127 = vpack.c.b16 %v1104, %v1103
    %v1128 = vpack.c.b16 %v1106, %v1105
    %v1129 = vpack.c.b16 %v1108, %v1107
    %v1130 = vpack.c.b16 %v1110, %v1109
    %v1131 = vpack.c.b16 %v1112, %v1111
    %v1132 = vpack.c.b16 %v1114, %v1113
    %v1133 = vpack.c.b16 %v1116, %v1115
    %v1134 = vpack.c.b16 %v1118, %v1117
    %1151 = vmatprep.subr.bf16.mxu0 0
    %1152 = vmatpush1.bf16.msra.mxu0 %v1119
    %1153 = vmatprep.subr.bf16.mxu0 0
    %1154 = vmatpush1.bf16.msra.mxu0 %v1120
    %1155 = vmatprep.subr.bf16.mxu0 0
    %1156 = vmatpush1.bf16.msra.mxu0 %v1121
    %1157 = vmatprep.subr.bf16.mxu0 0
    %1158 = vmatpush1.bf16.msra.mxu0 %v1122
    %1159 = vmatprep.subr.bf16.mxu0 0
    %1160 = vmatpush1.bf16.msra.mxu0 %v1123
    %1161 = vmatprep.subr.bf16.mxu0 0
    %1162 = vmatpush1.bf16.msra.mxu0 %v1124
    %1163 = vmatprep.subr.bf16.mxu0 0
    %1164 = vmatpush1.bf16.msra.mxu0 %v1125
    %1165 = vmatprep.subr.bf16.mxu0 0
    %1166 = vmatpush1.bf16.msra.mxu0 %v1126
    %1167 = vmatprep.subr.bf16.mxu0 0
    %1168 = vmatpush1.bf16.msra.mxu0 %v1127
    %1169 = vmatprep.subr.bf16.mxu0 0
    %1170 = vmatpush1.bf16.msra.mxu0 %v1128
    %1171 = vmatprep.subr.bf16.mxu0 0
    %1172 = vmatpush1.bf16.msra.mxu0 %v1129
    %1173 = vmatprep.subr.bf16.mxu0 0
    %1174 = vmatpush1.bf16.msra.mxu0 %v1130
    %1175 = vmatprep.subr.bf16.mxu0 0
    %1176 = vmatpush1.bf16.msra.mxu0 %v1131
    %1177 = vmatprep.subr.bf16.mxu0 0
    %1178 = vmatpush1.bf16.msra.mxu0 %v1132
    %1179 = vmatprep.subr.bf16.mxu0 0
    %1180 = vmatpush1.bf16.msra.mxu0 %v1133
    %1181 = vmatprep.subr.bf16.mxu0 0
    %1182 = vmatpush1.bf16.msra.mxu0 %v1134
    %1183 = vmatprep.mubr.bf16.mxu0 %v1015
    %1184 = vmatmul.mubr.bf16.gmra.mrb[0].mxu0 %v1014
    %v1185 = vpop.f32.mrb[0].mxu0
    %v1186 = vadd.f32 %v1053, %v1185
    %v1187 = vpop.f32.mrb[0].mxu0
    %v1188 = vpop.f32.mrb[0].mxu0
    %v1189 = vadd.f32 %v1053, %v1188
    %v1190 = vpop.f32.mrb[0].mxu0
    %1191 = vdwg.mxu0
    %v1192 = vpack.c.bf16 %v1189, %v1186
    %v1194 = vunpack.c.l.b16 %v1192
    %v1195 = vunpack.c.h.b16 %v1192
    %v1196 = vpack.c.b16 %v1194, %v1194
    %v1197 = vpack.c.b16 %v1195, %v1195
    %1200 = vst [vmem:[#allocation11] sm:$0xf] %v1196
    %1201 = vst [vmem:[#allocation11 + $0x4] sm:$0xf] %v1197
    // Predicated region
    $region58: #{tpu_custom_call.1} parent=1 // pred_check
      _
    $region59: #{tpu_custom_call.1} parent=1 // pred_check_branch
      %1203 = sbr.rel (0) target = $region61
    $region60: #{tpu_custom_call.1} parent=1 // pred_region
      %s1205 = ssub.s32 128, 128
      %1206 = vsyncadd [#allocation4], %s1205
      %s1207 = sshll.u32 [#allocation11], 4
      %s1208 = int_to_ptr.vmem [resolvable:$true] %s1207
      %1213 = dma.vmem_to_hbm [thread:$0]  %s1208, 128, %s9, [#allocation4], 64, 64, 4
    $region61: #{tpu_custom_call.1} parent=1 // pred_fallthru
      _
    // Predicated region
    $region62: #{tpu_custom_call.1} parent=1 // pred_check
      _
    $region63: #{tpu_custom_call.1} parent=1 // pred_check_branch
      %1215 = sbr.rel (0) target = $region65
    $region64: #{tpu_custom_call.1} parent=1 // pred_region
      %1216 = dma.done [#allocation4], 128
    $region65: #{tpu_custom_call.1} parent=1 // pred_fallthru
      _
    %1217 = vsyncpa [#allocation3], 1
    %1218 = vsyncpa [#allocation6], 1
    %1219 = vsyncpa [#allocation9], 1
    %1220 = vsyncpa [#allocation4], 1

</llo_original>
